<compile_context>
chip_gen: v7x
topology: tpu7x:2x2x1
jax: 0.10.0
libtpu: 0.0.40
codegen_flags: <defaults>
</compile_context>

<pallas_src>
import jax
import jax.numpy as jnp
from jax.experimental import pallas as pl
from jax.experimental.pallas import tpu as pltpu


# --------------------------------- kernel ------------------------------------

def se_kernel(x_ref, w1t_ref, w2t_ref, o_ref):
    f32 = jnp.float32
    x = x_ref[...]                                            # (Bt, C, N), native dtype
    n = x.shape[-1]

    # squeeze: AdaptiveAvgPool2d(1) == mean over the spatial (lane) axis,
    # accumulated in f32 (XLU reduce). Only the tiny pooled matrix is f32.
    pooled = jnp.sum(x, axis=2, dtype=f32) * (1.0 / n)        # (Bt, C)

    # excite: Linear(C->C//r, no bias) -> ReLU -> Linear(C//r->C, no bias) -> Sigmoid
    # Weights arrive pre-transposed, so both dots are plain MXU matmuls with
    # Bt output rows (no width-1 operands, no in-kernel relayout).
    h = jnp.maximum(
        jnp.dot(pooled, w1t_ref[...], preferred_element_type=f32), 0.0)   # (Bt, Cr)
    y = jax.nn.sigmoid(
        jnp.dot(h, w2t_ref[...], preferred_element_type=f32))            # (Bt, C)

    # scale: cast only the tiny gate; activation slab stays in native dtype.
    o_ref[...] = x * y.astype(o_ref.dtype)[:, :, None]


# ----------------------------- block-size choice ------------------------------

def _choose_batch_block(B, C, N, itemsize, budget_bytes):
    """Largest Bt dividing B s.t. double-buffered in+out blocks fit the budget,
    capped so the 'parallel' grid keeps >= 2 steps (feeds both v7x TCs)."""
    def block_bytes(bt):
        return 4 * bt * C * N * itemsize          # (in + out) x double-buffering
    cap = max(1, B // 2)
    best = 1
    for bt in range(1, cap + 1):
        if B % bt == 0 and block_bytes(bt) <= budget_bytes:
            best = bt
    return best


# -------------------------------- wrapper ------------------------------------

def se_forward(x, w1, w2):
    """x: (B, C, H, W) NCHW; w1: (C//r, C); w2: (C, C//r). Returns (B, C, H, W)."""
    B, C, H, W = x.shape
    N = H * W
    Cr = w1.shape[0]
    itemsize = jnp.dtype(x.dtype).itemsize

    xf = x.reshape(B, C, N)                       # free reshape, lane-dense (N on lanes)
    w1t = w1.T                                    # (C, Cr)
    w2t = w2.T                                    # (Cr, C)

    # TODO(synk): for 7x7 / 14x14 SE layers (N % 128 != 0) a channels-last HBM
    # layout would avoid masked lane stores; with NCHW inputs that needs an
    # extra wrapper-side transpose (a full HBM pass), so (C, N) blocks are kept.

    bt = _choose_batch_block(B, C, N, itemsize, budget_bytes=20 * 1024 * 1024)
    grid = (B // bt,)

    cost = pl.CostEstimate(
        flops=2 * B * C * N + 4 * B * C * Cr,     # pool + scale + two tiny FCs
        transcendentals=B * C,                    # sigmoid
        bytes_accessed=2 * B * C * N * itemsize
        + (w1.size + w2.size) * jnp.dtype(w1.dtype).itemsize,
    )

    out = pl.pallas_call(
        se_kernel,
        out_shape=jax.ShapeDtypeStruct((B, C, N), x.dtype),
        grid=grid,
        in_specs=[
            pl.BlockSpec((bt, C, N), lambda b: (b, 0, 0)),    # Bt batches per step
            pl.BlockSpec((C, Cr), lambda b: (0, 0)),          # fc1 weight (transposed)
            pl.BlockSpec((Cr, C), lambda b: (0, 0)),          # fc2 weight (transposed)
        ],
        out_specs=pl.BlockSpec((bt, C, N), lambda b: (b, 0, 0)),
        compiler_params=pltpu.CompilerParams(
            dimension_semantics=("parallel",),
            vmem_limit_bytes=32 * 1024 * 1024,
        ),
        cost_estimate=cost,
    )(xf, w1t, w2t)
    return out.reshape(B, C, H, W)


# ----------------------------- pure-JAX reference -----------------------------

def se_reference(x, w1, w2):
    y = jnp.mean(x, axis=(2, 3))                              # (B, C)
    y = jnp.maximum(y @ w1.T, 0.0)                            # (B, C//r)
    y = jax.nn.sigmoid(y @ w2.T)                              # (B, C)
    return x * y[:, :, None, None]


# ---------------------------------- main --------------------------------------

if __name__ == "__main__":
    key = jax.random.PRNGKey(0)
    B, C, H, W = 8, 64, 16, 16       # small shapes; B=8 exercises batch blocking
    reduction = 8
    Cr = C // reduction

    k_x, k_w1, k_w2 = jax.random.split(key, 3)
    # PyTorch Linear default init: U(-1/sqrt(fan_in), 1/sqrt(fan_in)), no biases here.
    w1 = jax.random.uniform(k_w1, (Cr, C), jnp.float32,
                            -1.0 / (C ** 0.5), 1.0 / (C ** 0.5))
    w2 = jax.random.uniform(k_w2, (C, Cr), jnp.float32,
                            -1.0 / (Cr ** 0.5), 1.0 / (Cr ** 0.5))
    x = jax.random.normal(k_x, (B, C, H, W), jnp.float32)

    out = jax.jit(se_forward)(x, w1, w2)
    out = jax.block_until_ready(out)

    ref = se_reference(x, w1, w2)
    assert out.shape == (B, C, H, W), out.shape
    assert jnp.all(jnp.isfinite(out))
    assert jnp.allclose(out, ref, rtol=1e-5, atol=1e-5), \
        float(jnp.max(jnp.abs(out - ref)))
    print("KERNEL_OK")
</pallas_src>

<mosaic_0001>
module attributes {stable_mosaic.version = 11 : i64} {
  func.func @se_kernel(%arg0: i32, %arg1: memref<4x64x256xf32, #tpu.memory_space<vmem>>, %arg2: memref<64x8xf32, #tpu.memory_space<vmem>>, %arg3: memref<8x64xf32, #tpu.memory_space<vmem>>, %arg4: memref<4x64x256xf32, #tpu.memory_space<vmem>>) attributes {dimension_semantics = [#tpu.dimension_semantics<parallel>], iteration_bounds = array<i64: 2>, scalar_prefetch = 0 : i64, scratch_operands = 0 : i64, tpu.core_type = #tpu.core_type<tc>, window_params = [{transform_indices = @transform_0, window_bounds = array<i64: 4, 64, 256>}, {pipeline_mode = #tpu.pipeline_mode<synchronous>, transform_indices = @transform_1, window_bounds = array<i64: 64, 8>}, {pipeline_mode = #tpu.pipeline_mode<synchronous>, transform_indices = @transform_2, window_bounds = array<i64: 8, 64>}, {transform_indices = @transform_3, window_bounds = array<i64: 4, 64, 256>}]} {
    %c0 = arith.constant 0 : index
    %c0_0 = arith.constant 0 : index
    %c0_1 = arith.constant 0 : index
    %0 = vector.load %arg1[%c0, %c0_0, %c0_1] : memref<4x64x256xf32, #tpu.memory_space<vmem>>, vector<4x64x256xf32>
    %cst = arith.constant dense<0.000000e+00> : vector<4x64xf32>
    %1 = vector.multi_reduction <add>, %0, %cst [2] : vector<4x64x256xf32> to vector<4x64xf32>
    %cst_2 = arith.constant 3.906250e-03 : f32
    %2 = vector.broadcast %cst_2 : f32 to vector<4x64xf32>
    %3 = arith.mulf %1, %2 : vector<4x64xf32>
    %c0_3 = arith.constant 0 : index
    %c0_4 = arith.constant 0 : index
    %4 = vector.load %arg2[%c0_3, %c0_4] : memref<64x8xf32, #tpu.memory_space<vmem>>, vector<64x8xf32>
    %cst_5 = arith.constant dense<0.000000e+00> : vector<4x8xf32>
    %5 = tpu.matmul %3, %4, %cst_5 {dimension_numbers = #tpu.dot_dimension_numbers<[1], [0], [0], [1], [0, 0, 1, 1], [], []>} : vector<4x64xf32>, vector<64x8xf32>, vector<4x8xf32> -> vector<4x8xf32>
    %cst_6 = arith.constant 0.000000e+00 : f32
    %6 = vector.broadcast %cst_6 : f32 to vector<4x8xf32>
    %7 = arith.maximumf %5, %6 : vector<4x8xf32>
    %c0_7 = arith.constant 0 : index
    %c0_8 = arith.constant 0 : index
    %8 = vector.load %arg3[%c0_7, %c0_8] : memref<8x64xf32, #tpu.memory_space<vmem>>, vector<8x64xf32>
    %cst_9 = arith.constant dense<0.000000e+00> : vector<4x64xf32>
    %9 = tpu.matmul %7, %8, %cst_9 {dimension_numbers = #tpu.dot_dimension_numbers<[1], [0], [0], [1], [0, 0, 1, 1], [], []>} : vector<4x8xf32>, vector<8x64xf32>, vector<4x64xf32> -> vector<4x64xf32>
    %10 = arith.negf %9 : vector<4x64xf32>
    %11 = math.exp %10 : vector<4x64xf32>
    %cst_10 = arith.constant 1.000000e+00 : f32
    %12 = vector.broadcast %cst_10 : f32 to vector<4x64xf32>
    %13 = arith.addf %12, %11 : vector<4x64xf32>
    %14 = arith.divf %12, %13 : vector<4x64xf32>
    %15 = vector.shape_cast %14 : vector<4x64xf32> to vector<4x64x1xf32>
    %16 = vector.broadcast %15 : vector<4x64x1xf32> to vector<4x64x256xf32>
    %17 = arith.mulf %0, %16 : vector<4x64x256xf32>
    %c0_11 = arith.constant 0 : index
    %c0_12 = arith.constant 0 : index
    %c0_13 = arith.constant 0 : index
    %18 = vector.load %arg4[%c0_11, %c0_12, %c0_13] : memref<4x64x256xf32, #tpu.memory_space<vmem>>, vector<4x64x256xf32>
    tpu.vector_store %arg4[%c0_11, %c0_12, %c0_13], %17 {strides = array<i32>} : memref<4x64x256xf32, #tpu.memory_space<vmem>>, vector<4x64x256xf32>,
    return
  }
  func.func @transform_0(%arg0: i32) -> (i32, i32, i32) {
    %c0_i32 = arith.constant 0 : i32
    %c0_i32_0 = arith.constant 0 : i32
    %c0_i32_1 = arith.constant 0 : i32
    return %arg0, %c0_i32, %c0_i32_0 : i32, i32, i32
  }
  func.func @transform_1(%arg0: i32) -> (i32, i32) {
    %c0_i32 = arith.constant 0 : i32
    %c0_i32_0 = arith.constant 0 : i32
    %c0_i32_1 = arith.constant 0 : i32
    return %c0_i32, %c0_i32_0 : i32, i32
  }
  func.func @transform_2(%arg0: i32) -> (i32, i32) {
    %c0_i32 = arith.constant 0 : i32
    %c0_i32_0 = arith.constant 0 : i32
    %c0_i32_1 = arith.constant 0 : i32
    return %c0_i32, %c0_i32_0 : i32, i32
  }
  func.func @transform_3(%arg0: i32) -> (i32, i32, i32) {
    %c0_i32 = arith.constant 0 : i32
    %c0_i32_0 = arith.constant 0 : i32
    %c0_i32_1 = arith.constant 0 : i32
    return %arg0, %c0_i32, %c0_i32_0 : i32, i32, i32
  }
}

</mosaic_0001>

<llo_original>
// kernel: se_forward.1
$region0: #{se_forward.1}
  #allocation0 [shape = 'u32[]', space=smem, size = 0x4, offset = 0x4, fixed_abs, tag = 'smem constant byte address 0x4 - core index']
  #allocation1 [shape = 'u32[144,128]{1,0:T(1,128)}', space=vmem, size = 0x12000, scoped, tag = 'internal scratch']
  %s0 = inlined_call_operand.vmem [shape: f32[8,64,256], index: 0, kind: input, shape index: {}]
  %s1 = inlined_call_operand.vmem [shape: f32[64,8], index: 1, kind: input, shape index: {}]
  %s2 = inlined_call_operand.vmem [shape: f32[8,64], index: 2, kind: input, shape index: {}]
  %s3 = inlined_call_operand.vmem [shape: f32[8,64,256], index: 3, kind: output, shape index: {}]
  %s4 = sld [smem:[#allocation0]]
  $region45: #{se_forward.1} parent=0
    _
  %s6 = ssub.s32 1, %s4
  %s7 = scalar_select 0, %s6, %s4
  loop: start=0, step=1, limit=4
  $region2: #{se_forward.1} parent=0 // loop_pre_header
    _
  $region3: #{se_forward.1} parent=0 // loop_header
    %s9 = sphi 0, %s13
    %p10 = scmp.ge.s32.totalorder %s9, 4
    %s19 = sphi 0, %s21
    %s22 = sphi 0, %s19
    %s23 = sphi 0, %s22
    %s39 = sphi 0, %s23
    %s43 = sphi 0, %s43
    %s45 = sphi 0, %s43
    %s46 = sphi 0, %s45
    %s60 = sphi 0, %s46
    %s64 = sphi 0, %s64
    %s66 = sphi 0, %s64
    %s67 = sphi 0, %s66
    %s81 = sphi 0, %s67
    %s87 = sphi 0, %s89
    %s90 = sphi 0, %s87
    %s91 = sphi 0, %s90
    %s107 = sphi 0, %s91
  $region4: #{se_forward.1} parent=0 // loop_header_branch
    %12 = sbr.rel (%p10) target = $region8
  $region5: #{se_forward.1} parent=0 // loop_body
    %s14 = ssub.s32 %s9, 1
    %s15 = ssub.s32 %s9, 2
    %s16 = sadd.s32 %s9, 1
    %s17 = ssub.s32 %s9, %s16
    %p18 = scmp.eq.s32.totalorder %s17, 0
    %s20 = sadd.s32 %s19, 1
    %s21 = scalar_select %p18, %s19, %s20
    %p24 = pneg %p18
    %p25 = scmp.eq.s32.totalorder %s9, 1
    %p26 = por %p24, %p25
    %p27 = scmp.ne.s32.totalorder %s19, %s22
    %p28 = scmp.eq.s32.totalorder %s9, 0
    %p29 = por %p27, %p28
    %p30 = scmp.ne.s32.totalorder %s19, %s22
    %p31 = scmp.eq.s32.totalorder %s14, 1
    %p32 = por %p30, %p31
    %p33 = scmp.ne.s32.totalorder %s22, %s23
    %p34 = scmp.eq.s32.totalorder %s14, 0
    %p35 = por %p33, %p34
    %p36 = scmp.ne.s32.totalorder %s22, %s23
    %p37 = scmp.eq.s32.totalorder %s15, 1
    %p38 = por %p36, %p37
    %p40 = scmp.ne.s32.totalorder %s23, %s39
    %p41 = scmp.eq.s32.totalorder %s15, 0
    %p42 = por %p40, %p41
    %s44 = sadd.s32 %s43, 1
    %p47 = scmp.eq.s32.totalorder %s9, 1
    %p48 = scmp.ne.s32.totalorder %s43, %s45
    %p49 = scmp.eq.s32.totalorder %s9, 0
    %p50 = por %p48, %p49
    %p51 = scmp.ne.s32.totalorder %s43, %s45
    %p52 = scmp.eq.s32.totalorder %s14, 1
    %p53 = por %p51, %p52
    %p54 = scmp.ne.s32.totalorder %s45, %s46
    %p55 = scmp.eq.s32.totalorder %s14, 0
    %p56 = por %p54, %p55
    %p57 = scmp.ne.s32.totalorder %s45, %s46
    %p58 = scmp.eq.s32.totalorder %s15, 1
    %p59 = por %p57, %p58
    %p61 = scmp.ne.s32.totalorder %s46, %s60
    %p62 = scmp.eq.s32.totalorder %s15, 0
    %p63 = por %p61, %p62
    %s65 = sadd.s32 %s64, 1
    %p68 = scmp.eq.s32.totalorder %s9, 1
    %p69 = scmp.ne.s32.totalorder %s64, %s66
    %p70 = scmp.eq.s32.totalorder %s9, 0
    %p71 = por %p69, %p70
    %p72 = scmp.ne.s32.totalorder %s64, %s66
    %p73 = scmp.eq.s32.totalorder %s14, 1
    %p74 = por %p72, %p73
    %p75 = scmp.ne.s32.totalorder %s66, %s67
    %p76 = scmp.eq.s32.totalorder %s14, 0
    %p77 = por %p75, %p76
    %p78 = scmp.ne.s32.totalorder %s66, %s67
    %p79 = scmp.eq.s32.totalorder %s15, 1
    %p80 = por %p78, %p79
    %p82 = scmp.ne.s32.totalorder %s67, %s81
    %p83 = scmp.eq.s32.totalorder %s15, 0
    %p84 = por %p82, %p83
    %s85 = ssub.s32 %s9, %s16
    %p86 = scmp.eq.s32.totalorder %s85, 0
    %s88 = sadd.s32 %s87, 1
    %s89 = scalar_select %p86, %s87, %s88
    %p92 = pneg %p86
    %p93 = scmp.eq.s32.totalorder %s9, 1
    %p94 = por %p92, %p93
    %p95 = scmp.ne.s32.totalorder %s87, %s90
    %p96 = scmp.eq.s32.totalorder %s9, 0
    %p97 = por %p95, %p96
    %p98 = scmp.ne.s32.totalorder %s87, %s90
    %p99 = scmp.eq.s32.totalorder %s14, 1
    %p100 = por %p98, %p99
    %p101 = scmp.ne.s32.totalorder %s90, %s91
    %p102 = scmp.eq.s32.totalorder %s14, 0
    %p103 = por %p101, %p102
    %p104 = scmp.ne.s32.totalorder %s90, %s91
    %p105 = scmp.eq.s32.totalorder %s15, 1
    %p106 = por %p104, %p105
    %p108 = scmp.ne.s32.totalorder %s91, %s107
    %p109 = scmp.eq.s32.totalorder %s15, 0
    %p110 = por %p108, %p109
    %p111 = scmp.le.s32.totalorder 1, %s9
    %p112 = scmp.lt.s32.totalorder %s9, 3
    %p113 = pnand %p111, %p112
    %p114 = pneg %p113
    // Predicated region
    $region9: #{se_forward.1} parent=5 // pred_check
      _
    $region10: #{se_forward.1} parent=5 // pred_check_branch
      %116 = sbr.rel (%p113) target = $region12
    $region11: #{se_forward.1} parent=5 // pred_region
      %s117 = ssub.s32 %s9, 1
      // Predicated region
      $region13: #{se_forward.1} parent=11 // pred_check
        %p118 = pneg %p56
      $region14: #{se_forward.1} parent=11 // pred_check_branch
        %120 = sbr.rel (%p118) target = $region16
      $region15: #{se_forward.1} parent=11 // pred_region
        _
      $region16: #{se_forward.1} parent=11 // pred_fallthru
        _
      // Predicated region
      $region17: #{se_forward.1} parent=11 // pred_check
        %p121 = pneg %p77
      $region18: #{se_forward.1} parent=11 // pred_check_branch
        %123 = sbr.rel (%p121) target = $region20
      $region19: #{se_forward.1} parent=11 // pred_region
        _
      $region20: #{se_forward.1} parent=11 // pred_fallthru
        _
    $region12: #{se_forward.1} parent=5 // pred_fallthru
      _
    %p124 = scmp.lt.s32.totalorder %s9, 2
    // Predicated region
    $region21: #{se_forward.1} parent=5 // pred_check
      %p125 = pneg %p124
    $region22: #{se_forward.1} parent=5 // pred_check_branch
      %127 = sbr.rel (%p125) target = $region24
    $region23: #{se_forward.1} parent=5 // pred_region
      // Predicated region
      $region25: #{se_forward.1} parent=23 // pred_check
        %p128 = pneg %p29
      $region26: #{se_forward.1} parent=23 // pred_check_branch
        %130 = sbr.rel (%p128) target = $region28
      $region27: #{se_forward.1} parent=23 // pred_region
        %s131 = smul.u32 4, %s9
        %p132 = scmp.lt.s32.totalorder %s131, 7
        %s133 = scalar_select %p132, %s131, 7
        %s134 = smul.addr %s133, 16
        %s135 = smul.addr %s134, 8
        %s136 = scalar_lea.vmem %s0, %s135
        %s137 = smul.u32 4, %s9
      $region28: #{se_forward.1} parent=23 // pred_fallthru
        _
    $region24: #{se_forward.1} parent=5 // pred_fallthru
      _
    %p138 = scmp.le.s32.totalorder 1, %s9
    %p139 = scmp.lt.s32.totalorder %s9, 3
    %p140 = pnand %p138, %p139
    %p141 = pneg %p140
    // Predicated region
    $region29: #{se_forward.1} parent=5 // pred_check
      _
    $region30: #{se_forward.1} parent=5 // pred_check_branch
      %143 = sbr.rel (%p140) target = $region32
    $region31: #{se_forward.1} parent=5 // pred_region
      %s144 = ssub.s32 %s9, 1
      %s145 = smul.u32 4, %s14
      %p146 = scmp.lt.s32.totalorder %s145, 7
      %s147 = scalar_select %p146, %s145, 7
      %s148 = smul.addr %s147, 16
      %s149 = smul.addr %s148, 8
      %s150 = scalar_lea.vmem %s0, %s149
      %p151 = pneg %p35
      %p152 = pneg %p32
      %p153 = pneg %p56
      %p154 = pneg %p53
      %p155 = pneg %p77
      %p156 = pneg %p74
      %p157 = pneg %p103
      %p158 = pneg %p100
      %s159 = smul.u32 4, %s14
      %p160 = scmp.lt.s32.totalorder %s159, 7
      %s161 = scalar_select %p160, %s159, 7
      %s162 = smul.addr %s161, 16
      %s163 = smul.addr %s162, 8
      %s164 = scalar_lea.vmem %s3, %s163
      %s165 = smul.u32 4, %s14
      %p166 = scmp.lt.s32.totalorder %s165, 7
      %s167 = scalar_select %p166, %s165, 7
      %s168 = smul.addr %s167, 16
      %s169 = smul.addr %s168, 8
      %s170 = scalar_lea.vmem %s0, %s169
      %s171 = smul.u32 4, %s14
      %s172 = smul.u32 4, %s14
      %p173 = scmp.lt.s32.totalorder %s172, 7
      %s174 = scalar_select %p173, %s172, 7
      %s175 = smul.addr %s174, 16
      %s176 = smul.addr %s175, 8
      %s177 = scalar_lea.vmem %s3, %s176
      %s178 = smul.u32 4, %s14
      %v179 = vld [vmem:[%s170] sm:$0xff]
      %v180 = vld [vmem:[%s170 + $0x8] sm:$0xff]
      %v181 = vld [vmem:[%s170 + $0x10] sm:$0xff]
      %v182 = vld [vmem:[%s170 + $0x18] sm:$0xff]
      %v183 = vld [vmem:[%s170 + $0x20] sm:$0xff]
      %v184 = vld [vmem:[%s170 + $0x28] sm:$0xff]
      %v185 = vld [vmem:[%s170 + $0x30] sm:$0xff]
      %v186 = vld [vmem:[%s170 + $0x38] sm:$0xff]
      %v187 = vld [vmem:[%s170 + $0x40] sm:$0xff]
      %v188 = vld [vmem:[%s170 + $0x48] sm:$0xff]
      %v189 = vld [vmem:[%s170 + $0x50] sm:$0xff]
      %v190 = vld [vmem:[%s170 + $0x58] sm:$0xff]
      %v191 = vld [vmem:[%s170 + $0x60] sm:$0xff]
      %v192 = vld [vmem:[%s170 + $0x68] sm:$0xff]
      %v193 = vld [vmem:[%s170 + $0x70] sm:$0xff]
      %v194 = vld [vmem:[%s170 + $0x78] sm:$0xff]
      %v195 = vld [vmem:[%s170 + $0x80] sm:$0xff]
      %v196 = vld [vmem:[%s170 + $0x88] sm:$0xff]
      %v197 = vld [vmem:[%s170 + $0x90] sm:$0xff]
      %v198 = vld [vmem:[%s170 + $0x98] sm:$0xff]
      %v199 = vld [vmem:[%s170 + $0xa0] sm:$0xff]
      %v200 = vld [vmem:[%s170 + $0xa8] sm:$0xff]
      %v201 = vld [vmem:[%s170 + $0xb0] sm:$0xff]
      %v202 = vld [vmem:[%s170 + $0xb8] sm:$0xff]
      %v203 = vld [vmem:[%s170 + $0xc0] sm:$0xff]
      %v204 = vld [vmem:[%s170 + $0xc8] sm:$0xff]
      %v205 = vld [vmem:[%s170 + $0xd0] sm:$0xff]
      %v206 = vld [vmem:[%s170 + $0xd8] sm:$0xff]
      %v207 = vld [vmem:[%s170 + $0xe0] sm:$0xff]
      %v208 = vld [vmem:[%s170 + $0xe8] sm:$0xff]
      %v209 = vld [vmem:[%s170 + $0xf0] sm:$0xff]
      %v210 = vld [vmem:[%s170 + $0xf8] sm:$0xff]
      %v211 = vld [vmem:[%s170 + $0x100] sm:$0xff]
      %v212 = vld [vmem:[%s170 + $0x108] sm:$0xff]
      %v213 = vld [vmem:[%s170 + $0x110] sm:$0xff]
      %v214 = vld [vmem:[%s170 + $0x118] sm:$0xff]
      %v215 = vld [vmem:[%s170 + $0x120] sm:$0xff]
      %v216 = vld [vmem:[%s170 + $0x128] sm:$0xff]
      %v217 = vld [vmem:[%s170 + $0x130] sm:$0xff]
      %v218 = vld [vmem:[%s170 + $0x138] sm:$0xff]
      %v219 = vld [vmem:[%s170 + $0x140] sm:$0xff]
      %v220 = vld [vmem:[%s170 + $0x148] sm:$0xff]
      %v221 = vld [vmem:[%s170 + $0x150] sm:$0xff]
      %v222 = vld [vmem:[%s170 + $0x158] sm:$0xff]
      %v223 = vld [vmem:[%s170 + $0x160] sm:$0xff]
      %v224 = vld [vmem:[%s170 + $0x168] sm:$0xff]
      %v225 = vld [vmem:[%s170 + $0x170] sm:$0xff]
      %v226 = vld [vmem:[%s170 + $0x178] sm:$0xff]
      %v227 = vld [vmem:[%s170 + $0x180] sm:$0xff]
      %v228 = vld [vmem:[%s170 + $0x188] sm:$0xff]
      %v229 = vld [vmem:[%s170 + $0x190] sm:$0xff]
      %v230 = vld [vmem:[%s170 + $0x198] sm:$0xff]
      %v231 = vld [vmem:[%s170 + $0x1a0] sm:$0xff]
      %v232 = vld [vmem:[%s170 + $0x1a8] sm:$0xff]
      %v233 = vld [vmem:[%s170 + $0x1b0] sm:$0xff]
      %v234 = vld [vmem:[%s170 + $0x1b8] sm:$0xff]
      %v235 = vld [vmem:[%s170 + $0x1c0] sm:$0xff]
      %v236 = vld [vmem:[%s170 + $0x1c8] sm:$0xff]
      %v237 = vld [vmem:[%s170 + $0x1d0] sm:$0xff]
      %v238 = vld [vmem:[%s170 + $0x1d8] sm:$0xff]
      %v239 = vld [vmem:[%s170 + $0x1e0] sm:$0xff]
      %v240 = vld [vmem:[%s170 + $0x1e8] sm:$0xff]
      %v241 = vld [vmem:[%s170 + $0x1f0] sm:$0xff]
      %v242 = vld [vmem:[%s170 + $0x1f8] sm:$0xff]
      %v243 = vadd.f32 %v179, %v180
      %244 = vadd.xlane.f32.xlu0 %v243
      %v245 = vpop.xlane.xlu0 %244
      %v246 = vadd.f32 %v181, %v182
      %247 = vadd.xlane.f32.xlu0 %v246
      %v248 = vpop.xlane.xlu0 %247
      %v249 = vadd.f32 %v183, %v184
      %250 = vadd.xlane.f32.xlu0 %v249
      %v251 = vpop.xlane.xlu0 %250
      %v252 = vadd.f32 %v185, %v186
      %253 = vadd.xlane.f32.xlu0 %v252
      %v254 = vpop.xlane.xlu0 %253
      %v255 = vadd.f32 %v187, %v188
      %256 = vadd.xlane.f32.xlu0 %v255
      %v257 = vpop.xlane.xlu0 %256
      %v258 = vadd.f32 %v189, %v190
      %259 = vadd.xlane.f32.xlu0 %v258
      %v260 = vpop.xlane.xlu0 %259
      %v261 = vadd.f32 %v191, %v192
      %262 = vadd.xlane.f32.xlu0 %v261
      %v263 = vpop.xlane.xlu0 %262
      %v264 = vadd.f32 %v193, %v194
      %265 = vadd.xlane.f32.xlu0 %v264
      %v266 = vpop.xlane.xlu0 %265
      %v267 = vadd.f32 %v195, %v196
      %268 = vadd.xlane.f32.xlu0 %v267
      %v269 = vpop.xlane.xlu0 %268
      %v270 = vadd.f32 %v197, %v198
      %271 = vadd.xlane.f32.xlu0 %v270
      %v272 = vpop.xlane.xlu0 %271
      %v273 = vadd.f32 %v199, %v200
      %274 = vadd.xlane.f32.xlu0 %v273
      %v275 = vpop.xlane.xlu0 %274
      %v276 = vadd.f32 %v201, %v202
      %277 = vadd.xlane.f32.xlu0 %v276
      %v278 = vpop.xlane.xlu0 %277
      %v279 = vadd.f32 %v203, %v204
      %280 = vadd.xlane.f32.xlu0 %v279
      %v281 = vpop.xlane.xlu0 %280
      %v282 = vadd.f32 %v205, %v206
      %283 = vadd.xlane.f32.xlu0 %v282
      %v284 = vpop.xlane.xlu0 %283
      %v285 = vadd.f32 %v207, %v208
      %286 = vadd.xlane.f32.xlu0 %v285
      %v287 = vpop.xlane.xlu0 %286
      %v288 = vadd.f32 %v209, %v210
      %289 = vadd.xlane.f32.xlu0 %v288
      %v290 = vpop.xlane.xlu0 %289
      %v291 = vadd.f32 %v211, %v212
      %292 = vadd.xlane.f32.xlu0 %v291
      %v293 = vpop.xlane.xlu0 %292
      %v294 = vadd.f32 %v213, %v214
      %295 = vadd.xlane.f32.xlu0 %v294
      %v296 = vpop.xlane.xlu0 %295
      %v297 = vadd.f32 %v215, %v216
      %298 = vadd.xlane.f32.xlu0 %v297
      %v299 = vpop.xlane.xlu0 %298
      %v300 = vadd.f32 %v217, %v218
      %301 = vadd.xlane.f32.xlu0 %v300
      %v302 = vpop.xlane.xlu0 %301
      %v303 = vadd.f32 %v219, %v220
      %304 = vadd.xlane.f32.xlu0 %v303
      %v305 = vpop.xlane.xlu0 %304
      %v306 = vadd.f32 %v221, %v222
      %307 = vadd.xlane.f32.xlu0 %v306
      %v308 = vpop.xlane.xlu0 %307
      %v309 = vadd.f32 %v223, %v224
      %310 = vadd.xlane.f32.xlu0 %v309
      %v311 = vpop.xlane.xlu0 %310
      %v312 = vadd.f32 %v225, %v226
      %313 = vadd.xlane.f32.xlu0 %v312
      %v314 = vpop.xlane.xlu0 %313
      %v315 = vadd.f32 %v227, %v228
      %316 = vadd.xlane.f32.xlu0 %v315
      %v317 = vpop.xlane.xlu0 %316
      %v318 = vadd.f32 %v229, %v230
      %319 = vadd.xlane.f32.xlu0 %v318
      %v320 = vpop.xlane.xlu0 %319
      %v321 = vadd.f32 %v231, %v232
      %322 = vadd.xlane.f32.xlu0 %v321
      %v323 = vpop.xlane.xlu0 %322
      %v324 = vadd.f32 %v233, %v234
      %325 = vadd.xlane.f32.xlu0 %v324
      %v326 = vpop.xlane.xlu0 %325
      %v327 = vadd.f32 %v235, %v236
      %328 = vadd.xlane.f32.xlu0 %v327
      %v329 = vpop.xlane.xlu0 %328
      %v330 = vadd.f32 %v237, %v238
      %331 = vadd.xlane.f32.xlu0 %v330
      %v332 = vpop.xlane.xlu0 %331
      %v333 = vadd.f32 %v239, %v240
      %334 = vadd.xlane.f32.xlu0 %v333
      %v335 = vpop.xlane.xlu0 %334
      %v336 = vadd.f32 %v241, %v242
      %337 = vadd.xlane.f32.xlu0 %v336
      %v338 = vpop.xlane.xlu0 %337
      %v339 = vmul.f32 %v245, 0.00390625
      %v340 = vmul.f32 %v248, 0.00390625
      %v341 = vmul.f32 %v251, 0.00390625
      %v342 = vmul.f32 %v254, 0.00390625
      %v343 = vmul.f32 %v257, 0.00390625
      %v344 = vmul.f32 %v260, 0.00390625
      %v345 = vmul.f32 %v263, 0.00390625
      %v346 = vmul.f32 %v266, 0.00390625
      %v347 = vmul.f32 %v269, 0.00390625
      %v348 = vmul.f32 %v272, 0.00390625
      %v349 = vmul.f32 %v275, 0.00390625
      %v350 = vmul.f32 %v278, 0.00390625
      %v351 = vmul.f32 %v281, 0.00390625
      %v352 = vmul.f32 %v284, 0.00390625
      %v353 = vmul.f32 %v287, 0.00390625
      %v354 = vmul.f32 %v290, 0.00390625
      %v355 = vmul.f32 %v293, 0.00390625
      %v356 = vmul.f32 %v296, 0.00390625
      %v357 = vmul.f32 %v299, 0.00390625
      %v358 = vmul.f32 %v302, 0.00390625
      %v359 = vmul.f32 %v305, 0.00390625
      %v360 = vmul.f32 %v308, 0.00390625
      %v361 = vmul.f32 %v311, 0.00390625
      %v362 = vmul.f32 %v314, 0.00390625
      %v363 = vmul.f32 %v317, 0.00390625
      %v364 = vmul.f32 %v320, 0.00390625
      %v365 = vmul.f32 %v323, 0.00390625
      %v366 = vmul.f32 %v326, 0.00390625
      %v367 = vmul.f32 %v329, 0.00390625
      %v368 = vmul.f32 %v332, 0.00390625
      %v369 = vmul.f32 %v335, 0.00390625
      %v370 = vmul.f32 %v338, 0.00390625
      %v371 = vld [vmem:[%s1] sm:$0xff]
      %v372 = vld [vmem:[%s1 + $0x8] sm:$0xff]
      %v373 = vld [vmem:[%s1 + $0x10] sm:$0xff]
      %v374 = vld [vmem:[%s1 + $0x18] sm:$0xff]
      %v375 = vld [vmem:[%s1 + $0x20] sm:$0xff]
      %v376 = vld [vmem:[%s1 + $0x28] sm:$0xff]
      %v377 = vld [vmem:[%s1 + $0x30] sm:$0xff]
      %v378 = vld [vmem:[%s1 + $0x38] sm:$0xff]
      %v411 = vlaneseq
      %v412 = vand.u32 %v411, 127
      %v413 = vlaneseq
      %v414 = vshrl.u32 %v413, 7
      %v415 = vsub.s32 %v412, %v414
      %v416 = vrot.slane %v339, %v415
      %v417 = vadd.s32 %v412, 4294967288
      %v418 = vlaneseq
      %v419 = vshrl.u32 %v418, 7
      %v420 = vsub.s32 %v417, %v419
      %v421 = vrot.slane %v340, %v420
      %vm422 = vcmask 130112
      %v423 = vsel %vm422, %v421, %v416
      %v424 = vadd.s32 %v412, 4294967280
      %v425 = vlaneseq
      %v426 = vshrl.u32 %v425, 7
      %v427 = vsub.s32 %v424, %v426
      %v428 = vrot.slane %v341, %v427
      %vm429 = vcmask 195712
      %v430 = vsel %vm429, %v428, %v423
      %v431 = vadd.s32 %v412, 4294967272
      %v432 = vlaneseq
      %v433 = vshrl.u32 %v432, 7
      %v434 = vsub.s32 %v431, %v433
      %v435 = vrot.slane %v342, %v434
      %vm436 = vcmask 261312
      %v437 = vsel %vm436, %v435, %v430
      %v438 = vadd.s32 %v412, 4294967264
      %v439 = vlaneseq
      %v440 = vshrl.u32 %v439, 7
      %v441 = vsub.s32 %v438, %v440
      %v442 = vrot.slane %v343, %v441
      %vm443 = vcmask 326912
      %v444 = vsel %vm443, %v442, %v437
      %v445 = vadd.s32 %v412, 4294967256
      %v446 = vlaneseq
      %v447 = vshrl.u32 %v446, 7
      %v448 = vsub.s32 %v445, %v447
      %v449 = vrot.slane %v344, %v448
      %vm450 = vcmask 392512
      %v451 = vsel %vm450, %v449, %v444
      %v452 = vadd.s32 %v412, 4294967248
      %v453 = vlaneseq
      %v454 = vshrl.u32 %v453, 7
      %v455 = vsub.s32 %v452, %v454
      %v456 = vrot.slane %v345, %v455
      %vm457 = vcmask 458112
      %v458 = vsel %vm457, %v456, %v451
      %v459 = vadd.s32 %v412, 4294967240
      %v460 = vlaneseq
      %v461 = vshrl.u32 %v460, 7
      %v462 = vsub.s32 %v459, %v461
      %v463 = vrot.slane %v346, %v462
      %vm464 = vcmask 523712
      %v465 = vsel %vm464, %v463, %v458
      %v466 = vlaneseq
      %v467 = vshrl.u32 %v466, 7
      %v468 = vsub.s32 %v412, %v467
      %v469 = vrot.slane %v347, %v468
      %v470 = vlaneseq
      %v471 = vshrl.u32 %v470, 7
      %v472 = vsub.s32 %v417, %v471
      %v473 = vrot.slane %v348, %v472
      %v474 = vsel %vm422, %v473, %v469
      %v475 = vlaneseq
      %v476 = vshrl.u32 %v475, 7
      %v477 = vsub.s32 %v424, %v476
      %v478 = vrot.slane %v349, %v477
      %v479 = vsel %vm429, %v478, %v474
      %v480 = vlaneseq
      %v481 = vshrl.u32 %v480, 7
      %v482 = vsub.s32 %v431, %v481
      %v483 = vrot.slane %v350, %v482
      %v484 = vsel %vm436, %v483, %v479
      %v485 = vlaneseq
      %v486 = vshrl.u32 %v485, 7
      %v487 = vsub.s32 %v438, %v486
      %v488 = vrot.slane %v351, %v487
      %v489 = vsel %vm443, %v488, %v484
      %v490 = vlaneseq
      %v491 = vshrl.u32 %v490, 7
      %v492 = vsub.s32 %v445, %v491
      %v493 = vrot.slane %v352, %v492
      %v494 = vsel %vm450, %v493, %v489
      %v495 = vlaneseq
      %v496 = vshrl.u32 %v495, 7
      %v497 = vsub.s32 %v452, %v496
      %v498 = vrot.slane %v353, %v497
      %v499 = vsel %vm457, %v498, %v494
      %v500 = vlaneseq
      %v501 = vshrl.u32 %v500, 7
      %v502 = vsub.s32 %v459, %v501
      %v503 = vrot.slane %v354, %v502
      %v504 = vsel %vm464, %v503, %v499
      %v505 = vlaneseq
      %v506 = vshrl.u32 %v505, 7
      %v507 = vsub.s32 %v412, %v506
      %v508 = vrot.slane %v355, %v507
      %v509 = vlaneseq
      %v510 = vshrl.u32 %v509, 7
      %v511 = vsub.s32 %v417, %v510
      %v512 = vrot.slane %v356, %v511
      %v513 = vsel %vm422, %v512, %v508
      %v514 = vlaneseq
      %v515 = vshrl.u32 %v514, 7
      %v516 = vsub.s32 %v424, %v515
      %v517 = vrot.slane %v357, %v516
      %v518 = vsel %vm429, %v517, %v513
      %v519 = vlaneseq
      %v520 = vshrl.u32 %v519, 7
      %v521 = vsub.s32 %v431, %v520
      %v522 = vrot.slane %v358, %v521
      %v523 = vsel %vm436, %v522, %v518
      %v524 = vlaneseq
      %v525 = vshrl.u32 %v524, 7
      %v526 = vsub.s32 %v438, %v525
      %v527 = vrot.slane %v359, %v526
      %v528 = vsel %vm443, %v527, %v523
      %v529 = vlaneseq
      %v530 = vshrl.u32 %v529, 7
      %v531 = vsub.s32 %v445, %v530
      %v532 = vrot.slane %v360, %v531
      %v533 = vsel %vm450, %v532, %v528
      %v534 = vlaneseq
      %v535 = vshrl.u32 %v534, 7
      %v536 = vsub.s32 %v452, %v535
      %v537 = vrot.slane %v361, %v536
      %v538 = vsel %vm457, %v537, %v533
      %v539 = vlaneseq
      %v540 = vshrl.u32 %v539, 7
      %v541 = vsub.s32 %v459, %v540
      %v542 = vrot.slane %v362, %v541
      %v543 = vsel %vm464, %v542, %v538
      %v544 = vlaneseq
      %v545 = vshrl.u32 %v544, 7
      %v546 = vsub.s32 %v412, %v545
      %v547 = vrot.slane %v363, %v546
      %v548 = vlaneseq
      %v549 = vshrl.u32 %v548, 7
      %v550 = vsub.s32 %v417, %v549
      %v551 = vrot.slane %v364, %v550
      %v552 = vsel %vm422, %v551, %v547
      %v553 = vlaneseq
      %v554 = vshrl.u32 %v553, 7
      %v555 = vsub.s32 %v424, %v554
      %v556 = vrot.slane %v365, %v555
      %v557 = vsel %vm429, %v556, %v552
      %v558 = vlaneseq
      %v559 = vshrl.u32 %v558, 7
      %v560 = vsub.s32 %v431, %v559
      %v561 = vrot.slane %v366, %v560
      %v562 = vsel %vm436, %v561, %v557
      %v563 = vlaneseq
      %v564 = vshrl.u32 %v563, 7
      %v565 = vsub.s32 %v438, %v564
      %v566 = vrot.slane %v367, %v565
      %v567 = vsel %vm443, %v566, %v562
      %v568 = vlaneseq
      %v569 = vshrl.u32 %v568, 7
      %v570 = vsub.s32 %v445, %v569
      %v571 = vrot.slane %v368, %v570
      %v572 = vsel %vm450, %v571, %v567
      %v573 = vlaneseq
      %v574 = vshrl.u32 %v573, 7
      %v575 = vsub.s32 %v452, %v574
      %v576 = vrot.slane %v369, %v575
      %v577 = vsel %vm457, %v576, %v572
      %v578 = vlaneseq
      %v579 = vshrl.u32 %v578, 7
      %v580 = vsub.s32 %v459, %v579
      %v581 = vrot.slane %v370, %v580
      %v582 = vsel %vm464, %v581, %v577
      %vm583 = vcmask 1041409
      %v584 = vsel %vm583, %v504, %v465
      %vm585 = vcmask 1042434
      %v586 = vsel %vm585, %v543, %v584
      %vm587 = vcmask 1043459
      %v588 = vsel %vm587, %v582, %v586
      %vm589 = vcmask 523264
      %v590 = vsel %vm589, %v588, 0
      %592 = vmatprep.subr.mxu0 0.0
      %593 = vmatpush1.msra.mxu0 %v371
      %594 = vmatprep.subr.mxu0 0.0
      %595 = vmatpush1.msra.mxu0 %v372
      %596 = vmatprep.subr.mxu0 0.0
      %597 = vmatpush1.msra.mxu0 %v373
      %598 = vmatprep.subr.mxu0 0.0
      %599 = vmatpush1.msra.mxu0 %v374
      %600 = vmatprep.subr.mxu0 0.0
      %601 = vmatpush1.msra.mxu0 %v375
      %602 = vmatprep.subr.mxu0 0.0
      %603 = vmatpush1.msra.mxu0 %v376
      %604 = vmatprep.subr.mxu0 0.0
      %605 = vmatpush1.msra.mxu0 %v377
      %606 = vmatprep.subr.mxu0 0.0
      %607 = vmatpush1.msra.mxu0 %v378
      %608 = vmatprep.subr.mxu0 0.0
      %609 = vmatpush1.msra.mxu0 0.0
      %610 = vmatprep.subr.mxu0 0.0
      %611 = vmatpush1.msra.mxu0 0.0
      %612 = vmatprep.subr.mxu0 0.0
      %613 = vmatpush1.msra.mxu0 0.0
      %614 = vmatprep.subr.mxu0 0.0
      %615 = vmatpush1.msra.mxu0 0.0
      %616 = vmatprep.subr.mxu0 0.0
      %617 = vmatpush1.msra.mxu0 0.0
      %618 = vmatprep.subr.mxu0 0.0
      %619 = vmatpush1.msra.mxu0 0.0
      %620 = vmatprep.subr.mxu0 0.0
      %621 = vmatpush1.msra.mxu0 0.0
      %622 = vmatprep.subr.mxu0 0.0
      %623 = vmatpush1.msra.mxu0 0.0
      %624 = vmatprep.subr.mxu0 0.0
      %625 = vmatpush1.msra.mxu0 0.0
      %626 = vmatprep.subr.mxu0 0.0
      %627 = vmatpush1.msra.mxu0 0.0
      %628 = vmatprep.subr.mxu0 0.0
      %629 = vmatpush1.msra.mxu0 0.0
      %630 = vmatprep.subr.mxu0 0.0
      %631 = vmatpush1.msra.mxu0 0.0
      %632 = vmatprep.subr.mxu0 0.0
      %633 = vmatpush1.msra.mxu0 0.0
      %634 = vmatprep.subr.mxu0 0.0
      %635 = vmatpush1.msra.mxu0 0.0
      %636 = vmatprep.subr.mxu0 0.0
      %637 = vmatpush1.msra.mxu0 0.0
      %638 = vmatprep.subr.mxu0 0.0
      %639 = vmatpush1.msra.mxu0 0.0
      %640 = vmatprep.subr.mxu0 0.0
      %641 = vmatpush1.msra.mxu0 0.0
      %642 = vmatprep.subr.mxu0 0.0
      %643 = vmatpush1.msra.mxu0 0.0
      %644 = vmatprep.subr.mxu0 0.0
      %645 = vmatpush1.msra.mxu0 0.0
      %646 = vmatprep.subr.mxu0 0.0
      %647 = vmatpush1.msra.mxu0 0.0
      %648 = vmatprep.subr.mxu0 0.0
      %649 = vmatpush1.msra.mxu0 0.0
      %650 = vmatprep.subr.mxu0 0.0
      %651 = vmatpush1.msra.mxu0 0.0
      %652 = vmatprep.subr.mxu0 0.0
      %653 = vmatpush1.msra.mxu0 0.0
      %654 = vmatprep.subr.mxu0 0.0
      %655 = vmatpush1.msra.mxu0 0.0
      %656 = vmatprep.mubr.f32.mxu0 0.0
      %657 = vmatmul.mubr.f32.gmra.mrb[0].mxu0 %v590
      %v658 = vpop.f32.mrb[0].mxu0
      %v659 = vadd.f32 0.0, %v658
      %v660 = vpop.f32.mrb[0].mxu0
      %661 = vdwg.mxu0
      %v662 = vmax.f32 %v659, 0.0
      %v663 = vld [vmem:[%s2] sm:$0xff]
      %vm664 = vcmask 64512
      %v666 = vsel %vm664, %v662, 0
      %668 = vmatprep.subr.mxu0 0.0
      %669 = vmatpush1.msra.mxu0 %v663
      %670 = vmatprep.subr.mxu0 0.0
      %671 = vmatpush1.msra.mxu0 0.0
      %672 = vmatprep.subr.mxu0 0.0
      %673 = vmatpush1.msra.mxu0 0.0
      %674 = vmatprep.subr.mxu0 0.0
      %675 = vmatpush1.msra.mxu0 0.0
      %676 = vmatprep.subr.mxu0 0.0
      %677 = vmatpush1.msra.mxu0 0.0
      %678 = vmatprep.subr.mxu0 0.0
      %679 = vmatpush1.msra.mxu0 0.0
      %680 = vmatprep.subr.mxu0 0.0
      %681 = vmatpush1.msra.mxu0 0.0
      %682 = vmatprep.subr.mxu0 0.0
      %683 = vmatpush1.msra.mxu0 0.0
      %684 = vmatprep.subr.mxu0 0.0
      %685 = vmatpush1.msra.mxu0 0.0
      %686 = vmatprep.subr.mxu0 0.0
      %687 = vmatpush1.msra.mxu0 0.0
      %688 = vmatprep.subr.mxu0 0.0
      %689 = vmatpush1.msra.mxu0 0.0
      %690 = vmatprep.subr.mxu0 0.0
      %691 = vmatpush1.msra.mxu0 0.0
      %692 = vmatprep.subr.mxu0 0.0
      %693 = vmatpush1.msra.mxu0 0.0
      %694 = vmatprep.subr.mxu0 0.0
      %695 = vmatpush1.msra.mxu0 0.0
      %696 = vmatprep.subr.mxu0 0.0
      %697 = vmatpush1.msra.mxu0 0.0
      %698 = vmatprep.subr.mxu0 0.0
      %699 = vmatpush1.msra.mxu0 0.0
      %700 = vmatprep.subr.mxu0 0.0
      %701 = vmatpush1.msra.mxu0 0.0
      %702 = vmatprep.subr.mxu0 0.0
      %703 = vmatpush1.msra.mxu0 0.0
      %704 = vmatprep.subr.mxu0 0.0
      %705 = vmatpush1.msra.mxu0 0.0
      %706 = vmatprep.subr.mxu0 0.0
      %707 = vmatpush1.msra.mxu0 0.0
      %708 = vmatprep.subr.mxu0 0.0
      %709 = vmatpush1.msra.mxu0 0.0
      %710 = vmatprep.subr.mxu0 0.0
      %711 = vmatpush1.msra.mxu0 0.0
      %712 = vmatprep.subr.mxu0 0.0
      %713 = vmatpush1.msra.mxu0 0.0
      %714 = vmatprep.subr.mxu0 0.0
      %715 = vmatpush1.msra.mxu0 0.0
      %716 = vmatprep.subr.mxu0 0.0
      %717 = vmatpush1.msra.mxu0 0.0
      %718 = vmatprep.subr.mxu0 0.0
      %719 = vmatpush1.msra.mxu0 0.0
      %720 = vmatprep.subr.mxu0 0.0
      %721 = vmatpush1.msra.mxu0 0.0
      %722 = vmatprep.subr.mxu0 0.0
      %723 = vmatpush1.msra.mxu0 0.0
      %724 = vmatprep.subr.mxu0 0.0
      %725 = vmatpush1.msra.mxu0 0.0
      %726 = vmatprep.subr.mxu0 0.0
      %727 = vmatpush1.msra.mxu0 0.0
      %728 = vmatprep.subr.mxu0 0.0
      %729 = vmatpush1.msra.mxu0 0.0
      %730 = vmatprep.subr.mxu0 0.0
      %731 = vmatpush1.msra.mxu0 0.0
      %732 = vmatprep.mubr.f32.mxu0 0.0
      %733 = vmatmul.mubr.f32.gmra.mrb[0].mxu0 %v666
      %v734 = vpop.f32.mrb[0].mxu0
      %v735 = vadd.f32 0.0, %v734
      %v736 = vpop.f32.mrb[0].mxu0
      %737 = vdwg.mxu0
      %v738 = vxor.u32 %v735, 2147483648
      %v739 = vmul.f32 %v738, 1.442695
      %v740 = vpow.pop %v739
      %v741 = vadd.f32 %v740, 1.0
      %v742 = vrcp.pop %v741
      %v743 = vmul.f32 1.0, %v742
      %v744 = vlaneseq
      %v745 = vshrl.u32 %v744, 7
      %v746 = vsub.s32 0, %v745
      %v747 = vrot.slane %v743, %v746
      %749 = vbcast.lane.b32.xlu0 %v747, 256
      %v750 = vpop.permute.xlu0 %749
      %s752 = sor.u32 256, 8
      %753 = vbcast.lane.b32.xlu0 %v747, %s752
      %v754 = vpop.permute.xlu0 %753
      %s756 = sor.u32 256, 16
      %757 = vbcast.lane.b32.xlu0 %v747, %s756
      %v758 = vpop.permute.xlu0 %757
      %s760 = sor.u32 256, 24
      %761 = vbcast.lane.b32.xlu0 %v747, %s760
      %v762 = vpop.permute.xlu0 %761
      %s764 = sor.u32 256, 32
      %765 = vbcast.lane.b32.xlu0 %v747, %s764
      %v766 = vpop.permute.xlu0 %765
      %s768 = sor.u32 256, 40
      %769 = vbcast.lane.b32.xlu0 %v747, %s768
      %v770 = vpop.permute.xlu0 %769
      %s772 = sor.u32 256, 48
      %773 = vbcast.lane.b32.xlu0 %v747, %s772
      %v774 = vpop.permute.xlu0 %773
      %s776 = sor.u32 256, 56
      %777 = vbcast.lane.b32.xlu0 %v747, %s776
      %v778 = vpop.permute.xlu0 %777
      %v779 = vlaneseq
      %v780 = vshrl.u32 %v779, 7
      %v781 = vsub.s32 1, %v780
      %v782 = vrot.slane %v743, %v781
      %784 = vbcast.lane.b32.xlu0 %v782, 256
      %v785 = vpop.permute.xlu0 %784
      %s787 = sor.u32 256, 8
      %788 = vbcast.lane.b32.xlu0 %v782, %s787
      %v789 = vpop.permute.xlu0 %788
      %s791 = sor.u32 256, 16
      %792 = vbcast.lane.b32.xlu0 %v782, %s791
      %v793 = vpop.permute.xlu0 %792
      %s795 = sor.u32 256, 24
      %796 = vbcast.lane.b32.xlu0 %v782, %s795
      %v797 = vpop.permute.xlu0 %796
      %s799 = sor.u32 256, 32
      %800 = vbcast.lane.b32.xlu0 %v782, %s799
      %v801 = vpop.permute.xlu0 %800
      %s803 = sor.u32 256, 40
      %804 = vbcast.lane.b32.xlu0 %v782, %s803
      %v805 = vpop.permute.xlu0 %804
      %s807 = sor.u32 256, 48
      %808 = vbcast.lane.b32.xlu0 %v782, %s807
      %v809 = vpop.permute.xlu0 %808
      %s811 = sor.u32 256, 56
      %812 = vbcast.lane.b32.xlu0 %v782, %s811
      %v813 = vpop.permute.xlu0 %812
      %v814 = vlaneseq
      %v815 = vshrl.u32 %v814, 7
      %v816 = vsub.s32 2, %v815
      %v817 = vrot.slane %v743, %v816
      %819 = vbcast.lane.b32.xlu0 %v817, 256
      %v820 = vpop.permute.xlu0 %819
      %s822 = sor.u32 256, 8
      %823 = vbcast.lane.b32.xlu0 %v817, %s822
      %v824 = vpop.permute.xlu0 %823
      %s826 = sor.u32 256, 16
      %827 = vbcast.lane.b32.xlu0 %v817, %s826
      %v828 = vpop.permute.xlu0 %827
      %s830 = sor.u32 256, 24
      %831 = vbcast.lane.b32.xlu0 %v817, %s830
      %v832 = vpop.permute.xlu0 %831
      %s834 = sor.u32 256, 32
      %835 = vbcast.lane.b32.xlu0 %v817, %s834
      %v836 = vpop.permute.xlu0 %835
      %s838 = sor.u32 256, 40
      %839 = vbcast.lane.b32.xlu0 %v817, %s838
      %v840 = vpop.permute.xlu0 %839
      %s842 = sor.u32 256, 48
      %843 = vbcast.lane.b32.xlu0 %v817, %s842
      %v844 = vpop.permute.xlu0 %843
      %s846 = sor.u32 256, 56
      %847 = vbcast.lane.b32.xlu0 %v817, %s846
      %v848 = vpop.permute.xlu0 %847
      %v849 = vlaneseq
      %v850 = vshrl.u32 %v849, 7
      %v851 = vsub.s32 3, %v850
      %v852 = vrot.slane %v743, %v851
      %854 = vbcast.lane.b32.xlu0 %v852, 256
      %v855 = vpop.permute.xlu0 %854
      %s857 = sor.u32 256, 8
      %858 = vbcast.lane.b32.xlu0 %v852, %s857
      %v859 = vpop.permute.xlu0 %858
      %s861 = sor.u32 256, 16
      %862 = vbcast.lane.b32.xlu0 %v852, %s861
      %v863 = vpop.permute.xlu0 %862
      %s865 = sor.u32 256, 24
      %866 = vbcast.lane.b32.xlu0 %v852, %s865
      %v867 = vpop.permute.xlu0 %866
      %s869 = sor.u32 256, 32
      %870 = vbcast.lane.b32.xlu0 %v852, %s869
      %v871 = vpop.permute.xlu0 %870
      %s873 = sor.u32 256, 40
      %874 = vbcast.lane.b32.xlu0 %v852, %s873
      %v875 = vpop.permute.xlu0 %874
      %s877 = sor.u32 256, 48
      %878 = vbcast.lane.b32.xlu0 %v852, %s877
      %v879 = vpop.permute.xlu0 %878
      %s881 = sor.u32 256, 56
      %882 = vbcast.lane.b32.xlu0 %v852, %s881
      %v883 = vpop.permute.xlu0 %882
      %v884 = vmul.f32 %v179, %v750
      %v885 = vmul.f32 %v180, %v750
      %v886 = vmul.f32 %v181, %v754
      %v887 = vmul.f32 %v182, %v754
      %v888 = vmul.f32 %v183, %v758
      %v889 = vmul.f32 %v184, %v758
      %v890 = vmul.f32 %v185, %v762
      %v891 = vmul.f32 %v186, %v762
      %v892 = vmul.f32 %v187, %v766
      %v893 = vmul.f32 %v188, %v766
      %v894 = vmul.f32 %v189, %v770
      %v895 = vmul.f32 %v190, %v770
      %v896 = vmul.f32 %v191, %v774
      %v897 = vmul.f32 %v192, %v774
      %v898 = vmul.f32 %v193, %v778
      %v899 = vmul.f32 %v194, %v778
      %v900 = vmul.f32 %v195, %v785
      %v901 = vmul.f32 %v196, %v785
      %v902 = vmul.f32 %v197, %v789
      %v903 = vmul.f32 %v198, %v789
      %v904 = vmul.f32 %v199, %v793
      %v905 = vmul.f32 %v200, %v793
      %v906 = vmul.f32 %v201, %v797
      %v907 = vmul.f32 %v202, %v797
      %v908 = vmul.f32 %v203, %v801
      %v909 = vmul.f32 %v204, %v801
      %v910 = vmul.f32 %v205, %v805
      %v911 = vmul.f32 %v206, %v805
      %v912 = vmul.f32 %v207, %v809
      %v913 = vmul.f32 %v208, %v809
      %v914 = vmul.f32 %v209, %v813
      %v915 = vmul.f32 %v210, %v813
      %v916 = vmul.f32 %v211, %v820
      %v917 = vmul.f32 %v212, %v820
      %v918 = vmul.f32 %v213, %v824
      %v919 = vmul.f32 %v214, %v824
      %v920 = vmul.f32 %v215, %v828
      %v921 = vmul.f32 %v216, %v828
      %v922 = vmul.f32 %v217, %v832
      %v923 = vmul.f32 %v218, %v832
      %v924 = vmul.f32 %v219, %v836
      %v925 = vmul.f32 %v220, %v836
      %v926 = vmul.f32 %v221, %v840
      %v927 = vmul.f32 %v222, %v840
      %v928 = vmul.f32 %v223, %v844
      %v929 = vmul.f32 %v224, %v844
      %v930 = vmul.f32 %v225, %v848
      %v931 = vmul.f32 %v226, %v848
      %v932 = vmul.f32 %v227, %v855
      %v933 = vmul.f32 %v228, %v855
      %v934 = vmul.f32 %v229, %v859
      %v935 = vmul.f32 %v230, %v859
      %v936 = vmul.f32 %v231, %v863
      %v937 = vmul.f32 %v232, %v863
      %v938 = vmul.f32 %v233, %v867
      %v939 = vmul.f32 %v234, %v867
      %v940 = vmul.f32 %v235, %v871
      %v941 = vmul.f32 %v236, %v871
      %v942 = vmul.f32 %v237, %v875
      %v943 = vmul.f32 %v238, %v875
      %v944 = vmul.f32 %v239, %v879
      %v945 = vmul.f32 %v240, %v879
      %v946 = vmul.f32 %v241, %v883
      %v947 = vmul.f32 %v242, %v883
      %948 = vst [vmem:[%s177] sm:$0xff] %v884
      %949 = vst [vmem:[%s177 + $0x8] sm:$0xff] %v885
      %950 = vst [vmem:[%s177 + $0x10] sm:$0xff] %v886
      %951 = vst [vmem:[%s177 + $0x18] sm:$0xff] %v887
      %952 = vst [vmem:[%s177 + $0x20] sm:$0xff] %v888
      %953 = vst [vmem:[%s177 + $0x28] sm:$0xff] %v889
      %954 = vst [vmem:[%s177 + $0x30] sm:$0xff] %v890
      %955 = vst [vmem:[%s177 + $0x38] sm:$0xff] %v891
      %956 = vst [vmem:[%s177 + $0x40] sm:$0xff] %v892
      %957 = vst [vmem:[%s177 + $0x48] sm:$0xff] %v893
      %958 = vst [vmem:[%s177 + $0x50] sm:$0xff] %v894
      %959 = vst [vmem:[%s177 + $0x58] sm:$0xff] %v895
      %960 = vst [vmem:[%s177 + $0x60] sm:$0xff] %v896
      %961 = vst [vmem:[%s177 + $0x68] sm:$0xff] %v897
      %962 = vst [vmem:[%s177 + $0x70] sm:$0xff] %v898
      %963 = vst [vmem:[%s177 + $0x78] sm:$0xff] %v899
      %964 = vst [vmem:[%s177 + $0x80] sm:$0xff] %v900
      %965 = vst [vmem:[%s177 + $0x88] sm:$0xff] %v901
      %966 = vst [vmem:[%s177 + $0x90] sm:$0xff] %v902
      %967 = vst [vmem:[%s177 + $0x98] sm:$0xff] %v903
      %968 = vst [vmem:[%s177 + $0xa0] sm:$0xff] %v904
      %969 = vst [vmem:[%s177 + $0xa8] sm:$0xff] %v905
      %970 = vst [vmem:[%s177 + $0xb0] sm:$0xff] %v906
      %971 = vst [vmem:[%s177 + $0xb8] sm:$0xff] %v907
      %972 = vst [vmem:[%s177 + $0xc0] sm:$0xff] %v908
      %973 = vst [vmem:[%s177 + $0xc8] sm:$0xff] %v909
      %974 = vst [vmem:[%s177 + $0xd0] sm:$0xff] %v910
      %975 = vst [vmem:[%s177 + $0xd8] sm:$0xff] %v911
      %976 = vst [vmem:[%s177 + $0xe0] sm:$0xff] %v912
      %977 = vst [vmem:[%s177 + $0xe8] sm:$0xff] %v913
      %978 = vst [vmem:[%s177 + $0xf0] sm:$0xff] %v914
      %979 = vst [vmem:[%s177 + $0xf8] sm:$0xff] %v915
      %980 = vst [vmem:[%s177 + $0x100] sm:$0xff] %v916
      %981 = vst [vmem:[%s177 + $0x108] sm:$0xff] %v917
      %982 = vst [vmem:[%s177 + $0x110] sm:$0xff] %v918
      %983 = vst [vmem:[%s177 + $0x118] sm:$0xff] %v919
      %984 = vst [vmem:[%s177 + $0x120] sm:$0xff] %v920
      %985 = vst [vmem:[%s177 + $0x128] sm:$0xff] %v921
      %986 = vst [vmem:[%s177 + $0x130] sm:$0xff] %v922
      %987 = vst [vmem:[%s177 + $0x138] sm:$0xff] %v923
      %988 = vst [vmem:[%s177 + $0x140] sm:$0xff] %v924
      %989 = vst [vmem:[%s177 + $0x148] sm:$0xff] %v925
      %990 = vst [vmem:[%s177 + $0x150] sm:$0xff] %v926
      %991 = vst [vmem:[%s177 + $0x158] sm:$0xff] %v927
      %992 = vst [vmem:[%s177 + $0x160] sm:$0xff] %v928
      %993 = vst [vmem:[%s177 + $0x168] sm:$0xff] %v929
      %994 = vst [vmem:[%s177 + $0x170] sm:$0xff] %v930
      %995 = vst [vmem:[%s177 + $0x178] sm:$0xff] %v931
      %996 = vst [vmem:[%s177 + $0x180] sm:$0xff] %v932
      %997 = vst [vmem:[%s177 + $0x188] sm:$0xff] %v933
      %998 = vst [vmem:[%s177 + $0x190] sm:$0xff] %v934
      %999 = vst [vmem:[%s177 + $0x198] sm:$0xff] %v935
      %1000 = vst [vmem:[%s177 + $0x1a0] sm:$0xff] %v936
      %1001 = vst [vmem:[%s177 + $0x1a8] sm:$0xff] %v937
      %1002 = vst [vmem:[%s177 + $0x1b0] sm:$0xff] %v938
      %1003 = vst [vmem:[%s177 + $0x1b8] sm:$0xff] %v939
      %1004 = vst [vmem:[%s177 + $0x1c0] sm:$0xff] %v940
      %1005 = vst [vmem:[%s177 + $0x1c8] sm:$0xff] %v941
      %1006 = vst [vmem:[%s177 + $0x1d0] sm:$0xff] %v942
      %1007 = vst [vmem:[%s177 + $0x1d8] sm:$0xff] %v943
      %1008 = vst [vmem:[%s177 + $0x1e0] sm:$0xff] %v944
      %1009 = vst [vmem:[%s177 + $0x1e8] sm:$0xff] %v945
      %1010 = vst [vmem:[%s177 + $0x1f0] sm:$0xff] %v946
      %1011 = vst [vmem:[%s177 + $0x1f8] sm:$0xff] %v947
      %s1012 = smul.u32 4, %s14
      %p1013 = scmp.lt.s32.totalorder %s1012, 7
      %s1014 = scalar_select %p1013, %s1012, 7
      %s1015 = smul.addr %s1014, 16
      %s1016 = smul.addr %s1015, 8
      %s1017 = scalar_lea.vmem %s3, %s1016
      // Predicated region
      $region33: #{se_forward.1} parent=31 // pred_check
        %p1018 = pneg %p100
      $region34: #{se_forward.1} parent=31 // pred_check_branch
        %1020 = sbr.rel (%p1018) target = $region36
      $region35: #{se_forward.1} parent=31 // pred_region
        %s1021 = smul.u32 4, %s14
      $region36: #{se_forward.1} parent=31 // pred_fallthru
        _
    $region32: #{se_forward.1} parent=5 // pred_fallthru
      _
    %p1022 = scmp.le.s32.totalorder 2, %s9
    // Predicated region
    $region37: #{se_forward.1} parent=5 // pred_check
      %p1023 = pneg %p1022
    $region38: #{se_forward.1} parent=5 // pred_check_branch
      %1025 = sbr.rel (%p1023) target = $region40
    $region39: #{se_forward.1} parent=5 // pred_region
      %s1026 = ssub.s32 %s9, 2
      // Predicated region
      $region41: #{se_forward.1} parent=39 // pred_check
        %p1027 = pneg %p106
      $region42: #{se_forward.1} parent=39 // pred_check_branch
        %1029 = sbr.rel (%p1027) target = $region44
      $region43: #{se_forward.1} parent=39 // pred_region
        %s1030 = smul.u32 4, %s15
        %p1031 = scmp.lt.s32.totalorder %s1030, 7
        %s1032 = scalar_select %p1031, %s1030, 7
        %s1033 = smul.addr %s1032, 16
        %s1034 = smul.addr %s1033, 8
        %s1035 = scalar_lea.vmem %s3, %s1034
      $region44: #{se_forward.1} parent=39 // pred_fallthru
        _
    $region40: #{se_forward.1} parent=5 // pred_fallthru
      _
  $region6: #{se_forward.1} parent=0 // loop_footer
    %s13 = sadd.s32 1, %s9
  $region7: #{se_forward.1} parent=0 // loop_footer_branch
    %8 = sbr.rel target = $region3
  $region8: #{se_forward.1} parent=0 // loop_exit
    _

</llo_original>
